<compile_context>
chip_gen: v6e
topology: v6e:2x2x1
jax: 0.10.0
libtpu: 0.0.40
codegen_flags: <defaults>
</compile_context>

<pallas_src>
import functools

import numpy as np
import jax
import jax.numpy as jnp
from jax.experimental import pallas as pl
from jax.experimental.pallas import tpu as pltpu


LEAKY_SLOPE = 0.2


def _round_up(x, m):
    return (x + m - 1) // m * m


# ----------------------------------------------------------------------------
# Kernel
# ----------------------------------------------------------------------------
def _dense_embedder_kernel(x_ref, w_ref, b_ref, o_ref, *, n_layers):
    """One batch tile through n_layers dense layers (LeakyReLU between them).

    x_ref: (TILE_B, D_pad) bf16 activations (feature lanes zero-padded)
    w_ref: (n_layers, D_pad, D_pad) bf16 weights stored as (C_in, C_out), zero-padded
    b_ref: (n_layers, 1, D_pad) f32 biases, zero-padded
    o_ref: (TILE_B, D_pad) f32 logits (padded lanes come out as exact zeros)
    """
    h = x_ref[...]                                   # bf16
    for i in range(n_layers):
        # bf16 x bf16 on the MXU, f32 accumulation.
        acc = jnp.dot(h, w_ref[i], preferred_element_type=jnp.float32)
        acc = acc + b_ref[i]                         # f32 bias add (VPU)
        if i < n_layers - 1:
            # LeakyReLU(0.2) in f32 (v5e has no bf16 VPU path).
            acc = jnp.where(acc > 0, acc, LEAKY_SLOPE * acc)
            h = acc.astype(jnp.bfloat16)             # back to bf16 for next MXU pass
        else:
            o_ref[...] = acc.astype(o_ref.dtype)


# ----------------------------------------------------------------------------
# Parameter construction / packing
# ----------------------------------------------------------------------------
def init_dense_embedder_params(key, input_dim, up_dim, depth=4, num_classes=10):
    """Parameters with shapes matching the PyTorch module (weights transposed to
    (C_in, C_out) for right-multiplication)."""
    dims = np.linspace(input_dim, up_dim, depth).astype(int)
    weights, biases = [], []
    # 1x1 conv layers
    for l in range(len(dims) - 1):
        c_in, c_out = int(dims[l]), int(dims[l + 1])
        key, kw, kb = jax.random.split(key, 3)
        bound = 1.0 / np.sqrt(c_in)
        weights.append(jax.random.uniform(kw, (c_in, c_out), jnp.float32, -bound, bound))
        biases.append(jax.random.uniform(kb, (c_out,), jnp.float32, -bound, bound))
    # final linear head
    key, kw, kb = jax.random.split(key, 3)
    bound = 1.0 / np.sqrt(up_dim)
    weights.append(jax.random.uniform(kw, (up_dim, num_classes), jnp.float32, -bound, bound))
    biases.append(jax.random.uniform(kb, (num_classes,), jnp.float32, -bound, bound))
    return weights, biases


def pack_dense_embedder_params(weights, biases):
    """Zero-pad every layer to a common lane-dense width and stack.

    Returns (w_stack bf16 (L, D_pad, D_pad), b_stack f32 (L, 1, D_pad), D_pad).
    bf16 conversion happens here, once, not inside the kernel.
    """
    all_dims = [weights[0].shape[0]] + [w.shape[1] for w in weights]
    d_pad = _round_up(max(all_dims), 128)
    n_layers = len(weights)
    w_stack = jnp.zeros((n_layers, d_pad, d_pad), jnp.bfloat16)
    b_stack = jnp.zeros((n_layers, 1, d_pad), jnp.float32)
    for i, (w, b) in enumerate(zip(weights, biases)):
        c_in, c_out = w.shape
        w_stack = w_stack.at[i, :c_in, :c_out].set(w.astype(jnp.bfloat16))
        b_stack = b_stack.at[i, 0, :c_out].set(b.astype(jnp.float32))
    return w_stack, b_stack, d_pad


# ----------------------------------------------------------------------------
# Wrapper
# ----------------------------------------------------------------------------
def dense_embedder_forward(x, w_stack, b_stack, num_classes, *, tile_b=256):
    """x: (B, input_dim) or (B, input_dim, 1, 1) NCHW.  Returns f32 (B, num_classes)."""
    if x.ndim == 4:
        assert x.shape[2] == 1 and x.shape[3] == 1, "only 1x1 spatial supported"
        x = x.reshape(x.shape[0], x.shape[1])
    assert x.ndim == 2

    batch, c_in = x.shape
    n_layers, d_pad, _ = w_stack.shape

    # Batch tile: multiple of 16 (bf16 sublane packing); clamp for small batches.
    tile_b = min(tile_b, _round_up(batch, 16))
    b_pad = _round_up(batch, tile_b)

    # Lane-dense, zero-padded activations in bf16 (single wrapper-side cast).
    x_p = jnp.zeros((b_pad, d_pad), jnp.bfloat16)
    x_p = x_p.at[:batch, :c_in].set(x.astype(jnp.bfloat16))

    grid = (b_pad // tile_b,)

    # VMEM budget: ~2x (double-buffered activation/output tiles + resident params),
    # generous headroom for in-flight f32 accumulators.
    x_tile_bytes = tile_b * d_pad * 2
    o_tile_bytes = tile_b * d_pad * 4
    param_bytes = n_layers * d_pad * d_pad * 2 + n_layers * d_pad * 4
    vmem_bytes = min(96 * 1024 * 1024,
                     max(8 * 1024 * 1024,
                         4 * (x_tile_bytes + o_tile_bytes + param_bytes)))

    flops = 2 * b_pad * n_layers * d_pad * d_pad
    bytes_accessed = (x_p.size * 2 + int(np.prod(w_stack.shape)) * 2
                      + int(np.prod(b_stack.shape)) * 4 + b_pad * d_pad * 4)

    out_padded = pl.pallas_call(
        functools.partial(_dense_embedder_kernel, n_layers=n_layers),
        out_shape=jax.ShapeDtypeStruct((b_pad, d_pad), jnp.float32),
        grid=grid,
        in_specs=[
            # Activations: pipelined over the batch grid.
            pl.BlockSpec((tile_b, d_pad), lambda i: (i, 0)),
            # Weights / biases: constant index_map -> VMEM-resident across steps.
            pl.BlockSpec((n_layers, d_pad, d_pad), lambda i: (0, 0, 0)),
            pl.BlockSpec((n_layers, 1, d_pad), lambda i: (0, 0, 0)),
        ],
        out_specs=pl.BlockSpec((tile_b, d_pad), lambda i: (i, 0)),
        compiler_params=pltpu.CompilerParams(
            dimension_semantics=("parallel",),
            vmem_limit_bytes=vmem_bytes,
        ),
        cost_estimate=pl.CostEstimate(
            flops=flops, transcendentals=0, bytes_accessed=bytes_accessed),
    )(x_p, w_stack, b_stack)

    # Slice padded batch rows / class lanes back off.
    return out_padded[:batch, :num_classes]


# ----------------------------------------------------------------------------
# Pure-JAX reference (same bf16 quantization of operands, f32 accumulation)
# ----------------------------------------------------------------------------
def _reference_forward(x, weights, biases):
    if x.ndim == 4:
        x = x.reshape(x.shape[0], x.shape[1])
    h = x.astype(jnp.bfloat16)
    n_layers = len(weights)
    out = None
    for i, (w, b) in enumerate(zip(weights, biases)):
        acc = jnp.dot(h.astype(jnp.float32),
                      w.astype(jnp.bfloat16).astype(jnp.float32))
        acc = acc + b.astype(jnp.float32)
        if i < n_layers - 1:
            acc = jnp.where(acc > 0, acc, LEAKY_SLOPE * acc)
            h = acc.astype(jnp.bfloat16)
        else:
            out = acc
    return out


if __name__ == "__main__":
    # Small shapes consistent with the module: labels/features -> latent.
    batch = 2
    input_dim = 4
    up_dim = 32
    depth = 4
    num_classes = 10

    key = jax.random.PRNGKey(0)
    key, kx = jax.random.split(key)
    # 2D input path of DenseEmbedder.forward (it inserts the 1x1 spatial dims).
    x = jax.random.normal(kx, (batch, input_dim), dtype=jnp.float32)

    weights, biases = init_dense_embedder_params(key, input_dim, up_dim, depth,
                                                 num_classes)
    w_stack, b_stack, _ = pack_dense_embedder_params(weights, biases)

    # TODO(synk): nn.Dropout(0.2) is treated as identity (eval mode); stochastic
    # training-time dropout would need pltpu.prng_seed/prng_random_bits.

    logits = dense_embedder_forward(x, w_stack, b_stack, num_classes)
    logits = jax.block_until_ready(logits)

    ref = _reference_forward(x, weights, biases)
    np.testing.assert_allclose(np.asarray(logits), np.asarray(ref),
                               rtol=5e-3, atol=5e-3)

    assert logits.shape == (batch, num_classes)
    assert logits.dtype == jnp.float32
    print("KERNEL_OK")
</pallas_src>

<mosaic_0001>
module attributes {stable_mosaic.version = 11 : i64} {
  func.func @_dense_embedder_kernel(%arg0: i32, %arg1: memref<16x128xbf16, #tpu.memory_space<vmem>>, %arg2: memref<4x128x128xbf16, #tpu.memory_space<vmem>>, %arg3: memref<4x1x128xf32, #tpu.memory_space<vmem>>, %arg4: memref<16x128xf32, #tpu.memory_space<vmem>>) attributes {dimension_semantics = [#tpu.dimension_semantics<parallel>], iteration_bounds = array<i64: 1>, scalar_prefetch = 0 : i64, scratch_operands = 0 : i64, tpu.core_type = #tpu.core_type<tc>, window_params = [{transform_indices = @transform_0, window_bounds = array<i64: 16, 128>}, {pipeline_mode = #tpu.pipeline_mode<synchronous>, transform_indices = @transform_1, window_bounds = array<i64: 4, 128, 128>}, {pipeline_mode = #tpu.pipeline_mode<synchronous>, transform_indices = @transform_2, window_bounds = array<i64: 4, 1, 128>}, {transform_indices = @transform_3, window_bounds = array<i64: 16, 128>}]} {
    %c0 = arith.constant 0 : index
    %c0_0 = arith.constant 0 : index
    %0 = vector.load %arg1[%c0, %c0_0] : memref<16x128xbf16, #tpu.memory_space<vmem>>, vector<16x128xbf16>
    %c0_1 = arith.constant 0 : index
    %c0_2 = arith.constant 0 : index
    %c0_3 = arith.constant 0 : index
    %1 = vector.load %arg2[%c0_1, %c0_2, %c0_3] : memref<4x128x128xbf16, #tpu.memory_space<vmem>>, vector<1x128x128xbf16>
    %2 = vector.shape_cast %1 : vector<1x128x128xbf16> to vector<128x128xbf16>
    %cst = arith.constant dense<0.000000e+00> : vector<16x128xf32>
    %3 = tpu.matmul %0, %2, %cst {dimension_numbers = #tpu.dot_dimension_numbers<[1], [0], [0], [1], [0, 0, 1, 1], [], []>} : vector<16x128xbf16>, vector<128x128xbf16>, vector<16x128xf32> -> vector<16x128xf32>
    %c0_4 = arith.constant 0 : index
    %c0_5 = arith.constant 0 : index
    %c0_6 = arith.constant 0 : index
    %4 = vector.load %arg3[%c0_4, %c0_5, %c0_6] : memref<4x1x128xf32, #tpu.memory_space<vmem>>, vector<1x1x128xf32>
    %5 = vector.shape_cast %4 : vector<1x1x128xf32> to vector<1x128xf32>
    %6 = vector.broadcast %5 : vector<1x128xf32> to vector<16x128xf32>
    %7 = arith.addf %3, %6 : vector<16x128xf32>
    %cst_7 = arith.constant 0.000000e+00 : f32
    %8 = vector.broadcast %cst_7 : f32 to vector<16x128xf32>
    %9 = arith.cmpf ogt, %7, %8 : vector<16x128xf32>
    %cst_8 = arith.constant 2.000000e-01 : f32
    %10 = vector.broadcast %cst_8 : f32 to vector<16x128xf32>
    %11 = arith.mulf %10, %7 : vector<16x128xf32>
    %12 = arith.select %9, %7, %11 : vector<16x128xi1>, vector<16x128xf32>
    %13 = arith.truncf %12 : vector<16x128xf32> to vector<16x128xbf16>
    %c1 = arith.constant 1 : index
    %c0_9 = arith.constant 0 : index
    %c0_10 = arith.constant 0 : index
    %14 = vector.load %arg2[%c1, %c0_9, %c0_10] : memref<4x128x128xbf16, #tpu.memory_space<vmem>>, vector<1x128x128xbf16>
    %15 = vector.shape_cast %14 : vector<1x128x128xbf16> to vector<128x128xbf16>
    %cst_11 = arith.constant dense<0.000000e+00> : vector<16x128xf32>
    %16 = tpu.matmul %13, %15, %cst_11 {dimension_numbers = #tpu.dot_dimension_numbers<[1], [0], [0], [1], [0, 0, 1, 1], [], []>} : vector<16x128xbf16>, vector<128x128xbf16>, vector<16x128xf32> -> vector<16x128xf32>
    %c1_12 = arith.constant 1 : index
    %c0_13 = arith.constant 0 : index
    %c0_14 = arith.constant 0 : index
    %17 = vector.load %arg3[%c1_12, %c0_13, %c0_14] : memref<4x1x128xf32, #tpu.memory_space<vmem>>, vector<1x1x128xf32>
    %18 = vector.shape_cast %17 : vector<1x1x128xf32> to vector<1x128xf32>
    %19 = vector.broadcast %18 : vector<1x128xf32> to vector<16x128xf32>
    %20 = arith.addf %16, %19 : vector<16x128xf32>
    %cst_15 = arith.constant 0.000000e+00 : f32
    %21 = vector.broadcast %cst_15 : f32 to vector<16x128xf32>
    %22 = arith.cmpf ogt, %20, %21 : vector<16x128xf32>
    %cst_16 = arith.constant 2.000000e-01 : f32
    %23 = vector.broadcast %cst_16 : f32 to vector<16x128xf32>
    %24 = arith.mulf %23, %20 : vector<16x128xf32>
    %25 = arith.select %22, %20, %24 : vector<16x128xi1>, vector<16x128xf32>
    %26 = arith.truncf %25 : vector<16x128xf32> to vector<16x128xbf16>
    %c2 = arith.constant 2 : index
    %c0_17 = arith.constant 0 : index
    %c0_18 = arith.constant 0 : index
    %27 = vector.load %arg2[%c2, %c0_17, %c0_18] : memref<4x128x128xbf16, #tpu.memory_space<vmem>>, vector<1x128x128xbf16>
    %28 = vector.shape_cast %27 : vector<1x128x128xbf16> to vector<128x128xbf16>
    %cst_19 = arith.constant dense<0.000000e+00> : vector<16x128xf32>
    %29 = tpu.matmul %26, %28, %cst_19 {dimension_numbers = #tpu.dot_dimension_numbers<[1], [0], [0], [1], [0, 0, 1, 1], [], []>} : vector<16x128xbf16>, vector<128x128xbf16>, vector<16x128xf32> -> vector<16x128xf32>
    %c2_20 = arith.constant 2 : index
    %c0_21 = arith.constant 0 : index
    %c0_22 = arith.constant 0 : index
    %30 = vector.load %arg3[%c2_20, %c0_21, %c0_22] : memref<4x1x128xf32, #tpu.memory_space<vmem>>, vector<1x1x128xf32>
    %31 = vector.shape_cast %30 : vector<1x1x128xf32> to vector<1x128xf32>
    %32 = vector.broadcast %31 : vector<1x128xf32> to vector<16x128xf32>
    %33 = arith.addf %29, %32 : vector<16x128xf32>
    %cst_23 = arith.constant 0.000000e+00 : f32
    %34 = vector.broadcast %cst_23 : f32 to vector<16x128xf32>
    %35 = arith.cmpf ogt, %33, %34 : vector<16x128xf32>
    %cst_24 = arith.constant 2.000000e-01 : f32
    %36 = vector.broadcast %cst_24 : f32 to vector<16x128xf32>
    %37 = arith.mulf %36, %33 : vector<16x128xf32>
    %38 = arith.select %35, %33, %37 : vector<16x128xi1>, vector<16x128xf32>
    %39 = arith.truncf %38 : vector<16x128xf32> to vector<16x128xbf16>
    %c3 = arith.constant 3 : index
    %c0_25 = arith.constant 0 : index
    %c0_26 = arith.constant 0 : index
    %40 = vector.load %arg2[%c3, %c0_25, %c0_26] : memref<4x128x128xbf16, #tpu.memory_space<vmem>>, vector<1x128x128xbf16>
    %41 = vector.shape_cast %40 : vector<1x128x128xbf16> to vector<128x128xbf16>
    %cst_27 = arith.constant dense<0.000000e+00> : vector<16x128xf32>
    %42 = tpu.matmul %39, %41, %cst_27 {dimension_numbers = #tpu.dot_dimension_numbers<[1], [0], [0], [1], [0, 0, 1, 1], [], []>} : vector<16x128xbf16>, vector<128x128xbf16>, vector<16x128xf32> -> vector<16x128xf32>
    %c3_28 = arith.constant 3 : index
    %c0_29 = arith.constant 0 : index
    %c0_30 = arith.constant 0 : index
    %43 = vector.load %arg3[%c3_28, %c0_29, %c0_30] : memref<4x1x128xf32, #tpu.memory_space<vmem>>, vector<1x1x128xf32>
    %44 = vector.shape_cast %43 : vector<1x1x128xf32> to vector<1x128xf32>
    %45 = vector.broadcast %44 : vector<1x128xf32> to vector<16x128xf32>
    %46 = arith.addf %42, %45 : vector<16x128xf32>
    %c0_31 = arith.constant 0 : index
    %c0_32 = arith.constant 0 : index
    %47 = vector.load %arg4[%c0_31, %c0_32] : memref<16x128xf32, #tpu.memory_space<vmem>>, vector<16x128xf32>
    tpu.vector_store %arg4[%c0_31, %c0_32], %46 {strides = array<i32>} : memref<16x128xf32, #tpu.memory_space<vmem>>, vector<16x128xf32>,
    return
  }
  func.func @transform_0(%arg0: i32) -> (i32, i32) {
    %c0_i32 = arith.constant 0 : i32
    %c0_i32_0 = arith.constant 0 : i32
    return %arg0, %c0_i32 : i32, i32
  }
  func.func @transform_1(%arg0: i32) -> (i32, i32, i32) {
    %c0_i32 = arith.constant 0 : i32
    %c0_i32_0 = arith.constant 0 : i32
    %c0_i32_1 = arith.constant 0 : i32
    %c0_i32_2 = arith.constant 0 : i32
    return %c0_i32, %c0_i32_0, %c0_i32_1 : i32, i32, i32
  }
  func.func @transform_2(%arg0: i32) -> (i32, i32, i32) {
    %c0_i32 = arith.constant 0 : i32
    %c0_i32_0 = arith.constant 0 : i32
    %c0_i32_1 = arith.constant 0 : i32
    %c0_i32_2 = arith.constant 0 : i32
    return %c0_i32, %c0_i32_0, %c0_i32_1 : i32, i32, i32
  }
  func.func @transform_3(%arg0: i32) -> (i32, i32) {
    %c0_i32 = arith.constant 0 : i32
    %c0_i32_0 = arith.constant 0 : i32
    return %arg0, %c0_i32 : i32, i32
  }
}

</mosaic_0001>

<llo_original>
// kernel: tpu_custom_call.1
$region0: #{tpu_custom_call.1}
  #allocation0 [shape = 'u32[]', space=smem, size = 0x4, offset = 0x4, fixed_abs, tag = 'smem constant byte address 0x4 - core index']
  #allocation1 [shape = 'u32[144,128]{1,0:T(1,128)}', space=vmem, size = 0x12000, scoped, tag = 'internal scratch']
  %s0 = inlined_call_operand.hbm [shape: bf16[16,128], index: 0, kind: input, shape index: {}]
  %s1 = inlined_call_operand.hbm [shape: bf16[4,128,128], index: 1, kind: input, shape index: {}]
  %s2 = inlined_call_operand.hbm [shape: f32[4,1,128], index: 2, kind: input, shape index: {}]
  %s3 = inlined_call_operand.hbm [shape: f32[16,128], index: 3, kind: output, shape index: {}]
  %s4 = sld [smem:[#allocation0]]
  $region34: #{tpu_custom_call.1} parent=0
    _
  %s6 = ssub.s32 1, %s4
  %s7 = scalar_select 0, %s6, %s4
  $region1: #{tpu_custom_call.1} parent=0
    #allocation2 [shape = 'u8[4096]{0}', space=vmem, size = 0x1000, scoped, tag = 'input window, operand 0, single buffered']
    #allocation3 [shape = 's32[1]{0}', space=sflag, size = 0x4, scoped, tag = 'scoped memory for tpu_custom_call.1']
    #allocation4 [shape = 's32[1]{0}', space=sflag, size = 0x4, scoped, tag = 'scoped memory for tpu_custom_call.1']
    #allocation5 [shape = 'u8[131072]{0}', space=vmem, size = 0x20000, scoped, tag = 'input window, operand 1, single buffered']
    #allocation6 [shape = 's32[1]{0}', space=sflag, size = 0x4, scoped, tag = 'scoped memory for tpu_custom_call.1']
    #allocation7 [shape = 'u8[2048]{0}', space=vmem, size = 0x800, scoped, tag = 'input window, operand 2, single buffered']
    #allocation8 [shape = 'u8[8192]{0}', space=vmem, size = 0x2000, scoped, tag = 'output window, operand 0, single buffered']
    %8 = vsyncpa [#allocation3], 0
    %9 = vsyncpa [#allocation6], 0
    %10 = vsyncpa [#allocation4], 0
    // Predicated region
    $region2: #{tpu_custom_call.1} parent=1 // pred_check
      _
    $region3: #{tpu_custom_call.1} parent=1 // pred_check_branch
      %12 = sbr.rel (0) target = $region5
    $region4: #{tpu_custom_call.1} parent=1 // pred_region
      %s14 = ssub.s32 128, 128
      %15 = vsyncadd [#allocation3], %s14
      %s16 = sshll.u32 [#allocation2], 4
      %s17 = int_to_ptr.vmem [resolvable:$true] %s16
      %22 = dma.hbm_to_vmem [thread:$0]  %s0, 128, %s17, [#allocation3], 64, 64, 4
    $region5: #{tpu_custom_call.1} parent=1 // pred_fallthru
      _
    // Predicated region
    $region6: #{tpu_custom_call.1} parent=1 // pred_check
      _
    $region7: #{tpu_custom_call.1} parent=1 // pred_check_branch
      %24 = sbr.rel (0) target = $region9
    $region8: #{tpu_custom_call.1} parent=1 // pred_region
      %s26 = ssub.s32 4096, 4096
      %27 = vsyncadd [#allocation6], %s26
      %s28 = sshll.u32 [#allocation5], 4
      %s29 = int_to_ptr.vmem [resolvable:$true] %s28
      %34 = dma.hbm_to_vmem [thread:$0]  %s1, 4096, %s29, [#allocation6], 64, 64, 4
    $region9: #{tpu_custom_call.1} parent=1 // pred_fallthru
      _
    // Predicated region
    $region10: #{tpu_custom_call.1} parent=1 // pred_check
      _
    $region11: #{tpu_custom_call.1} parent=1 // pred_check_branch
      %36 = sbr.rel (0) target = $region13
    $region12: #{tpu_custom_call.1} parent=1 // pred_region
      %s38 = ssub.s32 64, 64
      %39 = vsyncadd [#allocation6], %s38
      %s40 = sshll.u32 [#allocation7], 4
      %s41 = int_to_ptr.vmem [resolvable:$true] %s40
      %46 = dma.hbm_to_vmem [thread:$0]  %s2, 64, %s41, [#allocation6], 16, 16, 1
    $region13: #{tpu_custom_call.1} parent=1 // pred_fallthru
      _
    // Predicated region
    $region14: #{tpu_custom_call.1} parent=1 // pred_check
      _
    $region15: #{tpu_custom_call.1} parent=1 // pred_check_branch
      %48 = sbr.rel (0) target = $region17
    $region16: #{tpu_custom_call.1} parent=1 // pred_region
      %49 = dma.done [#allocation3], 128
    $region17: #{tpu_custom_call.1} parent=1 // pred_fallthru
      _
    // Predicated region
    $region18: #{tpu_custom_call.1} parent=1 // pred_check
      _
    $region19: #{tpu_custom_call.1} parent=1 // pred_check_branch
      %51 = sbr.rel (0) target = $region21
    $region20: #{tpu_custom_call.1} parent=1 // pred_region
      %52 = dma.done [#allocation6], 4096
    $region21: #{tpu_custom_call.1} parent=1 // pred_fallthru
      _
    // Predicated region
    $region22: #{tpu_custom_call.1} parent=1 // pred_check
      _
    $region23: #{tpu_custom_call.1} parent=1 // pred_check_branch
      %54 = sbr.rel (0) target = $region25
    $region24: #{tpu_custom_call.1} parent=1 // pred_region
      %55 = dma.done [#allocation6], 64
    $region25: #{tpu_custom_call.1} parent=1 // pred_fallthru
      _
    %v57 = vld [vmem:[#allocation2] sm:$0xf]
    %v58 = vld [vmem:[#allocation2 + $0x4] sm:$0xf]
    %v59 = vld [vmem:[#allocation5] sm:$0xf]
    %v60 = vld [vmem:[#allocation5 + $0x4] sm:$0xf]
    %v61 = vld [vmem:[#allocation5 + $0x8] sm:$0xf]
    %v62 = vld [vmem:[#allocation5 + $0xc] sm:$0xf]
    %v63 = vld [vmem:[#allocation5 + $0x10] sm:$0xf]
    %v64 = vld [vmem:[#allocation5 + $0x14] sm:$0xf]
    %v65 = vld [vmem:[#allocation5 + $0x18] sm:$0xf]
    %v66 = vld [vmem:[#allocation5 + $0x1c] sm:$0xf]
    %v67 = vld [vmem:[#allocation5 + $0x20] sm:$0xf]
    %v68 = vld [vmem:[#allocation5 + $0x24] sm:$0xf]
    %v69 = vld [vmem:[#allocation5 + $0x28] sm:$0xf]
    %v70 = vld [vmem:[#allocation5 + $0x2c] sm:$0xf]
    %v71 = vld [vmem:[#allocation5 + $0x30] sm:$0xf]
    %v72 = vld [vmem:[#allocation5 + $0x34] sm:$0xf]
    %v73 = vld [vmem:[#allocation5 + $0x38] sm:$0xf]
    %v74 = vld [vmem:[#allocation5 + $0x3c] sm:$0xf]
    %v75 = vld [vmem:[#allocation7] sm:$0x1]
    %v77 = vlaneseq
    %v78 = vshrl.u32 %v77, 7
    %v79 = vsub.s32 0, %v78
    %v80 = vrot.slane %v75, %v79
    %v84 = vunpack.c.l.b16 %v57
    %v85 = vunpack.c.l.b16 %v58
    %v86 = vpack.c.b16 %v85, %v84
    %v104 = vunpack.c.l.b16 %v59
    %v105 = vunpack.c.l.b16 %v60
    %v106 = vunpack.c.l.b16 %v61
    %v107 = vunpack.c.l.b16 %v62
    %v108 = vunpack.c.l.b16 %v63
    %v109 = vunpack.c.l.b16 %v64
    %v110 = vunpack.c.l.b16 %v65
    %v111 = vunpack.c.l.b16 %v66
    %v112 = vunpack.c.l.b16 %v67
    %v113 = vunpack.c.l.b16 %v68
    %v114 = vunpack.c.l.b16 %v69
    %v115 = vunpack.c.l.b16 %v70
    %v116 = vunpack.c.l.b16 %v71
    %v117 = vunpack.c.l.b16 %v72
    %v118 = vunpack.c.l.b16 %v73
    %v119 = vunpack.c.l.b16 %v74
    %v120 = vpack.c.b16 %v105, %v104
    %v121 = vpack.c.b16 %v107, %v106
    %v122 = vpack.c.b16 %v109, %v108
    %v123 = vpack.c.b16 %v111, %v110
    %v124 = vpack.c.b16 %v113, %v112
    %v125 = vpack.c.b16 %v115, %v114
    %v126 = vpack.c.b16 %v117, %v116
    %v127 = vpack.c.b16 %v119, %v118
    %136 = vmatprep.subr.bf16.mxu0 0
    %137 = vmatpush1.bf16.msra.mxu0 %v127
    %138 = vmatprep.subr.bf16.mxu0 0
    %139 = vmatpush1.bf16.msra.mxu0 %v126
    %140 = vmatprep.subr.bf16.mxu0 0
    %141 = vmatpush1.bf16.msra.mxu0 %v125
    %142 = vmatprep.subr.bf16.mxu0 0
    %143 = vmatpush1.bf16.msra.mxu0 %v124
    %144 = vmatprep.subr.bf16.mxu0 0
    %145 = vmatpush1.bf16.msra.mxu0 %v123
    %146 = vmatprep.subr.bf16.mxu0 0
    %147 = vmatpush1.bf16.msra.mxu0 %v122
    %148 = vmatprep.subr.bf16.mxu0 0
    %149 = vmatpush1.bf16.msra.mxu0 %v121
    %150 = vmatprep.subr.bf16.mxu0 0
    %151 = vmatpush1.bf16.msra.mxu0 %v120
    %152 = vmatprep.subr.bf16.mxu0 0
    %153 = vmatpush2.bf16.msra.mxu0 0
    %154 = vmatprep.subr.bf16.mxu0 0
    %155 = vmatpush2.bf16.msra.mxu0 0
    %156 = vmatprep.subr.bf16.mxu0 0
    %157 = vmatpush2.bf16.msra.mxu0 0
    %158 = vmatprep.subr.bf16.mxu0 0
    %159 = vmatpush2.bf16.msra.mxu0 0
    %160 = vmatprep.subr.bf16.mxu0 0
    %161 = vmatpush2.bf16.msra.mxu0 0
    %162 = vmatprep.subr.bf16.mxu0 0
    %163 = vmatpush2.bf16.msra.mxu0 0
    %164 = vmatprep.subr.bf16.mxu0 0
    %165 = vmatpush2.bf16.msra.mxu0 0
    %166 = vmatprep.subr.bf16.mxu0 0
    %167 = vmatpush2.bf16.msra.mxu0 0
    %168 = vmatprep.mubr.bf16.mxu0 0
    %169 = vmatmul.mubr.bf16.gmra.mxu0 %v86
    %v170 = vpop.f32.mrf.mxu0
    %v171 = vadd.f32 %v80, %v170
    %v172 = vpop.f32.mrf.mxu0
    %v173 = vpop.f32.mrf.mxu0
    %v174 = vadd.f32 %v80, %v173
    %v175 = vpop.f32.mrf.mxu0
    %176 = vdwg.mxu0
    %vm177 = vcmp.gt.f32.partialorder %v171, 0.0
    %vm178 = vcmp.gt.f32.partialorder %v174, 0.0
    %v179 = vmul.f32 %v171, 0.2
    %v180 = vmul.f32 %v174, 0.2
    %v181 = vsel %vm177, %v171, %v179
    %v182 = vsel %vm178, %v174, %v180
    %v183 = vpack.c.bf16 %v182, %v181
    %s184 = scalar_lea.vmem [#allocation5], 64
    %v185 = vld [vmem:[%s184] sm:$0xf]
    %v186 = vld [vmem:[%s184 + $0x4] sm:$0xf]
    %v187 = vld [vmem:[%s184 + $0x8] sm:$0xf]
    %v188 = vld [vmem:[%s184 + $0xc] sm:$0xf]
    %v189 = vld [vmem:[%s184 + $0x10] sm:$0xf]
    %v190 = vld [vmem:[%s184 + $0x14] sm:$0xf]
    %v191 = vld [vmem:[%s184 + $0x18] sm:$0xf]
    %v192 = vld [vmem:[%s184 + $0x1c] sm:$0xf]
    %v193 = vld [vmem:[%s184 + $0x20] sm:$0xf]
    %v194 = vld [vmem:[%s184 + $0x24] sm:$0xf]
    %v195 = vld [vmem:[%s184 + $0x28] sm:$0xf]
    %v196 = vld [vmem:[%s184 + $0x2c] sm:$0xf]
    %v197 = vld [vmem:[%s184 + $0x30] sm:$0xf]
    %v198 = vld [vmem:[%s184 + $0x34] sm:$0xf]
    %v199 = vld [vmem:[%s184 + $0x38] sm:$0xf]
    %v200 = vld [vmem:[%s184 + $0x3c] sm:$0xf]
    %s201 = scalar_lea.vmem [#allocation7], 1
    %v202 = vld [vmem:[%s201] sm:$0x1]
    %v204 = vlaneseq
    %v205 = vshrl.u32 %v204, 7
    %v206 = vsub.s32 0, %v205
    %v207 = vrot.slane %v202, %v206
    %v225 = vunpack.c.l.b16 %v185
    %v226 = vunpack.c.l.b16 %v186
    %v227 = vunpack.c.l.b16 %v187
    %v228 = vunpack.c.l.b16 %v188
    %v229 = vunpack.c.l.b16 %v189
    %v230 = vunpack.c.l.b16 %v190
    %v231 = vunpack.c.l.b16 %v191
    %v232 = vunpack.c.l.b16 %v192
    %v233 = vunpack.c.l.b16 %v193
    %v234 = vunpack.c.l.b16 %v194
    %v235 = vunpack.c.l.b16 %v195
    %v236 = vunpack.c.l.b16 %v196
    %v237 = vunpack.c.l.b16 %v197
    %v238 = vunpack.c.l.b16 %v198
    %v239 = vunpack.c.l.b16 %v199
    %v240 = vunpack.c.l.b16 %v200
    %v241 = vpack.c.b16 %v226, %v225
    %v242 = vpack.c.b16 %v228, %v227
    %v243 = vpack.c.b16 %v230, %v229
    %v244 = vpack.c.b16 %v232, %v231
    %v245 = vpack.c.b16 %v234, %v233
    %v246 = vpack.c.b16 %v236, %v235
    %v247 = vpack.c.b16 %v238, %v237
    %v248 = vpack.c.b16 %v240, %v239
    %257 = vmatprep.subr.bf16.mxu0 0
    %258 = vmatpush1.bf16.msra.mxu0 %v248
    %259 = vmatprep.subr.bf16.mxu0 0
    %260 = vmatpush1.bf16.msra.mxu0 %v247
    %261 = vmatprep.subr.bf16.mxu0 0
    %262 = vmatpush1.bf16.msra.mxu0 %v246
    %263 = vmatprep.subr.bf16.mxu0 0
    %264 = vmatpush1.bf16.msra.mxu0 %v245
    %265 = vmatprep.subr.bf16.mxu0 0
    %266 = vmatpush1.bf16.msra.mxu0 %v244
    %267 = vmatprep.subr.bf16.mxu0 0
    %268 = vmatpush1.bf16.msra.mxu0 %v243
    %269 = vmatprep.subr.bf16.mxu0 0
    %270 = vmatpush1.bf16.msra.mxu0 %v242
    %271 = vmatprep.subr.bf16.mxu0 0
    %272 = vmatpush1.bf16.msra.mxu0 %v241
    %273 = vmatprep.subr.bf16.mxu0 0
    %274 = vmatpush2.bf16.msra.mxu0 0
    %275 = vmatprep.subr.bf16.mxu0 0
    %276 = vmatpush2.bf16.msra.mxu0 0
    %277 = vmatprep.subr.bf16.mxu0 0
    %278 = vmatpush2.bf16.msra.mxu0 0
    %279 = vmatprep.subr.bf16.mxu0 0
    %280 = vmatpush2.bf16.msra.mxu0 0
    %281 = vmatprep.subr.bf16.mxu0 0
    %282 = vmatpush2.bf16.msra.mxu0 0
    %283 = vmatprep.subr.bf16.mxu0 0
    %284 = vmatpush2.bf16.msra.mxu0 0
    %285 = vmatprep.subr.bf16.mxu0 0
    %286 = vmatpush2.bf16.msra.mxu0 0
    %287 = vmatprep.subr.bf16.mxu0 0
    %288 = vmatpush2.bf16.msra.mxu0 0
    %289 = vmatprep.mubr.bf16.mxu0 0
    %290 = vmatmul.mubr.bf16.gmra.mxu0 %v183
    %v291 = vpop.f32.mrf.mxu0
    %v292 = vadd.f32 %v207, %v291
    %v293 = vpop.f32.mrf.mxu0
    %v294 = vpop.f32.mrf.mxu0
    %v295 = vadd.f32 %v207, %v294
    %v296 = vpop.f32.mrf.mxu0
    %297 = vdwg.mxu0
    %vm298 = vcmp.gt.f32.partialorder %v292, 0.0
    %vm299 = vcmp.gt.f32.partialorder %v295, 0.0
    %v300 = vmul.f32 %v292, 0.2
    %v301 = vmul.f32 %v295, 0.2
    %v302 = vsel %vm298, %v292, %v300
    %v303 = vsel %vm299, %v295, %v301
    %v304 = vpack.c.bf16 %v303, %v302
    %s305 = scalar_lea.vmem [#allocation5], 128
    %v306 = vld [vmem:[%s305] sm:$0xf]
    %v307 = vld [vmem:[%s305 + $0x4] sm:$0xf]
    %v308 = vld [vmem:[%s305 + $0x8] sm:$0xf]
    %v309 = vld [vmem:[%s305 + $0xc] sm:$0xf]
    %v310 = vld [vmem:[%s305 + $0x10] sm:$0xf]
    %v311 = vld [vmem:[%s305 + $0x14] sm:$0xf]
    %v312 = vld [vmem:[%s305 + $0x18] sm:$0xf]
    %v313 = vld [vmem:[%s305 + $0x1c] sm:$0xf]
    %v314 = vld [vmem:[%s305 + $0x20] sm:$0xf]
    %v315 = vld [vmem:[%s305 + $0x24] sm:$0xf]
    %v316 = vld [vmem:[%s305 + $0x28] sm:$0xf]
    %v317 = vld [vmem:[%s305 + $0x2c] sm:$0xf]
    %v318 = vld [vmem:[%s305 + $0x30] sm:$0xf]
    %v319 = vld [vmem:[%s305 + $0x34] sm:$0xf]
    %v320 = vld [vmem:[%s305 + $0x38] sm:$0xf]
    %v321 = vld [vmem:[%s305 + $0x3c] sm:$0xf]
    %s322 = scalar_lea.vmem [#allocation7], 2
    %v323 = vld [vmem:[%s322] sm:$0x1]
    %v325 = vlaneseq
    %v326 = vshrl.u32 %v325, 7
    %v327 = vsub.s32 0, %v326
    %v328 = vrot.slane %v323, %v327
    %v346 = vunpack.c.l.b16 %v306
    %v347 = vunpack.c.l.b16 %v307
    %v348 = vunpack.c.l.b16 %v308
    %v349 = vunpack.c.l.b16 %v309
    %v350 = vunpack.c.l.b16 %v310
    %v351 = vunpack.c.l.b16 %v311
    %v352 = vunpack.c.l.b16 %v312
    %v353 = vunpack.c.l.b16 %v313
    %v354 = vunpack.c.l.b16 %v314
    %v355 = vunpack.c.l.b16 %v315
    %v356 = vunpack.c.l.b16 %v316
    %v357 = vunpack.c.l.b16 %v317
    %v358 = vunpack.c.l.b16 %v318
    %v359 = vunpack.c.l.b16 %v319
    %v360 = vunpack.c.l.b16 %v320
    %v361 = vunpack.c.l.b16 %v321
    %v362 = vpack.c.b16 %v347, %v346
    %v363 = vpack.c.b16 %v349, %v348
    %v364 = vpack.c.b16 %v351, %v350
    %v365 = vpack.c.b16 %v353, %v352
    %v366 = vpack.c.b16 %v355, %v354
    %v367 = vpack.c.b16 %v357, %v356
    %v368 = vpack.c.b16 %v359, %v358
    %v369 = vpack.c.b16 %v361, %v360
    %378 = vmatprep.subr.bf16.mxu0 0
    %379 = vmatpush1.bf16.msra.mxu0 %v369
    %380 = vmatprep.subr.bf16.mxu0 0
    %381 = vmatpush1.bf16.msra.mxu0 %v368
    %382 = vmatprep.subr.bf16.mxu0 0
    %383 = vmatpush1.bf16.msra.mxu0 %v367
    %384 = vmatprep.subr.bf16.mxu0 0
    %385 = vmatpush1.bf16.msra.mxu0 %v366
    %386 = vmatprep.subr.bf16.mxu0 0
    %387 = vmatpush1.bf16.msra.mxu0 %v365
    %388 = vmatprep.subr.bf16.mxu0 0
    %389 = vmatpush1.bf16.msra.mxu0 %v364
    %390 = vmatprep.subr.bf16.mxu0 0
    %391 = vmatpush1.bf16.msra.mxu0 %v363
    %392 = vmatprep.subr.bf16.mxu0 0
    %393 = vmatpush1.bf16.msra.mxu0 %v362
    %394 = vmatprep.subr.bf16.mxu0 0
    %395 = vmatpush2.bf16.msra.mxu0 0
    %396 = vmatprep.subr.bf16.mxu0 0
    %397 = vmatpush2.bf16.msra.mxu0 0
    %398 = vmatprep.subr.bf16.mxu0 0
    %399 = vmatpush2.bf16.msra.mxu0 0
    %400 = vmatprep.subr.bf16.mxu0 0
    %401 = vmatpush2.bf16.msra.mxu0 0
    %402 = vmatprep.subr.bf16.mxu0 0
    %403 = vmatpush2.bf16.msra.mxu0 0
    %404 = vmatprep.subr.bf16.mxu0 0
    %405 = vmatpush2.bf16.msra.mxu0 0
    %406 = vmatprep.subr.bf16.mxu0 0
    %407 = vmatpush2.bf16.msra.mxu0 0
    %408 = vmatprep.subr.bf16.mxu0 0
    %409 = vmatpush2.bf16.msra.mxu0 0
    %410 = vmatprep.mubr.bf16.mxu0 0
    %411 = vmatmul.mubr.bf16.gmra.mxu0 %v304
    %v412 = vpop.f32.mrf.mxu0
    %v413 = vadd.f32 %v328, %v412
    %v414 = vpop.f32.mrf.mxu0
    %v415 = vpop.f32.mrf.mxu0
    %v416 = vadd.f32 %v328, %v415
    %v417 = vpop.f32.mrf.mxu0
    %418 = vdwg.mxu0
    %vm419 = vcmp.gt.f32.partialorder %v413, 0.0
    %vm420 = vcmp.gt.f32.partialorder %v416, 0.0
    %v421 = vmul.f32 %v413, 0.2
    %v422 = vmul.f32 %v416, 0.2
    %v423 = vsel %vm419, %v413, %v421
    %v424 = vsel %vm420, %v416, %v422
    %v425 = vpack.c.bf16 %v424, %v423
    %s426 = scalar_lea.vmem [#allocation5], 192
    %v427 = vld [vmem:[%s426] sm:$0xf]
    %v428 = vld [vmem:[%s426 + $0x4] sm:$0xf]
    %v429 = vld [vmem:[%s426 + $0x8] sm:$0xf]
    %v430 = vld [vmem:[%s426 + $0xc] sm:$0xf]
    %v431 = vld [vmem:[%s426 + $0x10] sm:$0xf]
    %v432 = vld [vmem:[%s426 + $0x14] sm:$0xf]
    %v433 = vld [vmem:[%s426 + $0x18] sm:$0xf]
    %v434 = vld [vmem:[%s426 + $0x1c] sm:$0xf]
    %v435 = vld [vmem:[%s426 + $0x20] sm:$0xf]
    %v436 = vld [vmem:[%s426 + $0x24] sm:$0xf]
    %v437 = vld [vmem:[%s426 + $0x28] sm:$0xf]
    %v438 = vld [vmem:[%s426 + $0x2c] sm:$0xf]
    %v439 = vld [vmem:[%s426 + $0x30] sm:$0xf]
    %v440 = vld [vmem:[%s426 + $0x34] sm:$0xf]
    %v441 = vld [vmem:[%s426 + $0x38] sm:$0xf]
    %v442 = vld [vmem:[%s426 + $0x3c] sm:$0xf]
    %s443 = scalar_lea.vmem [#allocation7], 3
    %v444 = vld [vmem:[%s443] sm:$0x1]
    %v446 = vlaneseq
    %v447 = vshrl.u32 %v446, 7
    %v448 = vsub.s32 0, %v447
    %v449 = vrot.slane %v444, %v448
    %v467 = vunpack.c.l.b16 %v427
    %v468 = vunpack.c.l.b16 %v428
    %v469 = vunpack.c.l.b16 %v429
    %v470 = vunpack.c.l.b16 %v430
    %v471 = vunpack.c.l.b16 %v431
    %v472 = vunpack.c.l.b16 %v432
    %v473 = vunpack.c.l.b16 %v433
    %v474 = vunpack.c.l.b16 %v434
    %v475 = vunpack.c.l.b16 %v435
    %v476 = vunpack.c.l.b16 %v436
    %v477 = vunpack.c.l.b16 %v437
    %v478 = vunpack.c.l.b16 %v438
    %v479 = vunpack.c.l.b16 %v439
    %v480 = vunpack.c.l.b16 %v440
    %v481 = vunpack.c.l.b16 %v441
    %v482 = vunpack.c.l.b16 %v442
    %v483 = vpack.c.b16 %v468, %v467
    %v484 = vpack.c.b16 %v470, %v469
    %v485 = vpack.c.b16 %v472, %v471
    %v486 = vpack.c.b16 %v474, %v473
    %v487 = vpack.c.b16 %v476, %v475
    %v488 = vpack.c.b16 %v478, %v477
    %v489 = vpack.c.b16 %v480, %v479
    %v490 = vpack.c.b16 %v482, %v481
    %499 = vmatprep.subr.bf16.mxu0 0
    %500 = vmatpush1.bf16.msra.mxu0 %v490
    %501 = vmatprep.subr.bf16.mxu0 0
    %502 = vmatpush1.bf16.msra.mxu0 %v489
    %503 = vmatprep.subr.bf16.mxu0 0
    %504 = vmatpush1.bf16.msra.mxu0 %v488
    %505 = vmatprep.subr.bf16.mxu0 0
    %506 = vmatpush1.bf16.msra.mxu0 %v487
    %507 = vmatprep.subr.bf16.mxu0 0
    %508 = vmatpush1.bf16.msra.mxu0 %v486
    %509 = vmatprep.subr.bf16.mxu0 0
    %510 = vmatpush1.bf16.msra.mxu0 %v485
    %511 = vmatprep.subr.bf16.mxu0 0
    %512 = vmatpush1.bf16.msra.mxu0 %v484
    %513 = vmatprep.subr.bf16.mxu0 0
    %514 = vmatpush1.bf16.msra.mxu0 %v483
    %515 = vmatprep.subr.bf16.mxu0 0
    %516 = vmatpush2.bf16.msra.mxu0 0
    %517 = vmatprep.subr.bf16.mxu0 0
    %518 = vmatpush2.bf16.msra.mxu0 0
    %519 = vmatprep.subr.bf16.mxu0 0
    %520 = vmatpush2.bf16.msra.mxu0 0
    %521 = vmatprep.subr.bf16.mxu0 0
    %522 = vmatpush2.bf16.msra.mxu0 0
    %523 = vmatprep.subr.bf16.mxu0 0
    %524 = vmatpush2.bf16.msra.mxu0 0
    %525 = vmatprep.subr.bf16.mxu0 0
    %526 = vmatpush2.bf16.msra.mxu0 0
    %527 = vmatprep.subr.bf16.mxu0 0
    %528 = vmatpush2.bf16.msra.mxu0 0
    %529 = vmatprep.subr.bf16.mxu0 0
    %530 = vmatpush2.bf16.msra.mxu0 0
    %531 = vmatprep.mubr.bf16.mxu0 0
    %532 = vmatmul.mubr.bf16.gmra.mxu0 %v425
    %v533 = vpop.f32.mrf.mxu0
    %v534 = vadd.f32 %v449, %v533
    %v535 = vpop.f32.mrf.mxu0
    %v536 = vpop.f32.mrf.mxu0
    %v537 = vadd.f32 %v449, %v536
    %v538 = vpop.f32.mrf.mxu0
    %539 = vdwg.mxu0
    %540 = vst [vmem:[#allocation8] sm:$0xff] %v534
    %541 = vst [vmem:[#allocation8 + $0x8] sm:$0xff] %v537
    // Predicated region
    $region26: #{tpu_custom_call.1} parent=1 // pred_check
      _
    $region27: #{tpu_custom_call.1} parent=1 // pred_check_branch
      %543 = sbr.rel (0) target = $region29
    $region28: #{tpu_custom_call.1} parent=1 // pred_region
      %s545 = ssub.s32 256, 256
      %546 = vsyncadd [#allocation4], %s545
      %s547 = sshll.u32 [#allocation8], 4
      %s548 = int_to_ptr.vmem [resolvable:$true] %s547
      %553 = dma.vmem_to_hbm [thread:$0]  %s548, 256, %s3, [#allocation4], 128, 128, 8
    $region29: #{tpu_custom_call.1} parent=1 // pred_fallthru
      _
    // Predicated region
    $region30: #{tpu_custom_call.1} parent=1 // pred_check
      _
    $region31: #{tpu_custom_call.1} parent=1 // pred_check_branch
      %555 = sbr.rel (0) target = $region33
    $region32: #{tpu_custom_call.1} parent=1 // pred_region
      %556 = dma.done [#allocation4], 256
    $region33: #{tpu_custom_call.1} parent=1 // pred_fallthru
      _
    %557 = vsyncpa [#allocation3], 1
    %558 = vsyncpa [#allocation6], 1
    %559 = vsyncpa [#allocation4], 1

</llo_original>
